<compile_context>
chip_gen: v7x
topology: tpu7x:2x2x1
jax: 0.10.0
libtpu: 0.0.40
codegen_flags: <defaults>
</compile_context>

<pallas_src>
import jax
import jax.numpy as jnp
from jax.experimental import pallas as pl
from jax.experimental.pallas import tpu as pltpu

# ----- problem configuration (module hyper-parameters) -----------------------
N_NODES = 8          # number of nodes
N_EDGES = 16         # number of edges
C_IN    = 4          # in_irreps  = "4x0e"
C_SH    = 1          # sh_irreps  = "1x0e"
C_OUT   = 8          # out_irreps = "8x0e"
FE      = 16         # n_edge_features
HID     = 16         # hidden_features (defaults to n_edge_features)
M_TP    = C_IN * C_SH            # number of (i,j) input paths
WN      = M_TP * C_OUT           # tp.weight_numel for scalar irreps
EPS_BN  = 1e-5


def _tpconv_kernel(ei_ref, naT_ref, eaT_ref, shT_ref,
                   wmat_ref, cols_ref, padT_ref, outT_ref):
    """Whole fused forward pass; single grid point, everything resident in VMEM."""
    f32 = jnp.float32
    ci, n_nodes = naT_ref.shape          # [C_in, N]
    fe, e_edges = eaT_ref.shape          # [F_e, E]
    csh = shT_ref.shape[0]               # C_sh
    co = outT_ref.shape[0]               # C_out
    m = ci * csh                         # number of input paths
    wn = m * co                          # tp.weight_numel
    hid = wmat_ref.shape[0] - wn         # hidden_features

    # ---- unpack packed parameter slabs (all offsets multiples of 8 -> free views) ----
    w1T = wmat_ref[0:hid, :]                                  # [HID, F_e]
    w2T = wmat_ref[hid:hid + wn, :]                           # [M*C_out, HID]
    b1c = cols_ref[0:hid, :]                                  # [HID, 1]
    b2c = cols_ref[hid:hid + wn, :]                           # [M*C_out, 1]
    gamma = cols_ref[hid + wn:hid + wn + co, :]               # [C_out, 1]
    beta = cols_ref[hid + wn + co:hid + wn + 2 * co, :]       # [C_out, 1]

    # ---- one-hot gather / scatter matrices from edge_index (one reused iota) --------
    # NOTE: O(N*E); fine at these sizes, f32 kept for exact parity with the reference.
    #       See TODO(synk) above for the index/segment form (and bf16) at scale.
    src = ei_ref[0:1, :]                                      # [1, E] int32 (edge_src)
    dst = ei_ref[1:2, :]                                      # [1, E] int32 (edge_dst)
    iota_ne = jax.lax.broadcasted_iota(jnp.int32, (n_nodes, e_edges), 0)
    gathT = (iota_ne == dst).astype(f32)                      # [N, E]: edge_dst[e] == n
    scatT = (iota_ne == src).astype(f32)                      # [N, E]: edge_src[e] == n

    # gather node_attr[edge_dst]^T as an MXU matmul (lane-dense in E)
    xT = jnp.dot(naT_ref[...], gathT, preferred_element_type=f32)        # [C_in, E]

    # ---- fc1: Linear -> ReLU -> (Dropout p=0 is identity) ---------------------------
    hT = jnp.dot(w1T, eaT_ref[...], preferred_element_type=f32) + b1c    # [HID, E]
    hT = jnp.maximum(hT, 0.0)

    # ---- fc2: per-edge tensor-product weights, ONE matmul ---------------------------
    wT = jnp.dot(w2T, hT, preferred_element_type=f32) + b2c              # [M*C_out, E]

    # ---- scalar FullyConnectedTensorProduct: M sublane-sliced VPU FMAs ---------------
    # xsh^T[m, e] = x[e, i] * sh[e, j],  m = i*C_sh + j  (C_sh == 1 -> plain row bcast)
    xshT = xT * shT_ref[...]                                             # [M, E]
    acc = xshT[0:1, :] * wT[0:co, :]
    for mm in range(1, m):
        acc = acc + xshT[mm:mm + 1, :] * wT[mm * co:(mm + 1) * co, :]
    tpT = acc * (1.0 / float(m) ** 0.5)                                  # [C_out, E]
    # TODO(synk): norm = 1/sqrt(mul_in1*mul_in2) and the w[e, m*C_out+k] ordering follow
    #             e3nn's single 'uvw' instruction for scalar irreps; diff vs e3nn if exact
    #             parity with a trained checkpoint is required.

    # ---- scatter(tp, edge_src, reduce='mean'): A @ B^T on the MXU, exact divide ------
    dn = (((1,), (1,)), ((), ()))                                        # contract on E
    ssumT = jax.lax.dot_general(tpT, scatT, dn, preferred_element_type=f32)      # [C_out, N]
    cnt = jax.lax.dot_general(jnp.ones((1, e_edges), f32), scatT, dn,
                              preferred_element_type=f32)                        # [1, N]
    outT = ssumT / jnp.maximum(cnt, 1.0)

    # ---- residual: out + F.pad(node_attr, (0, C_out - C_in)) (tiny eye-embed matmul) --
    outT = outT + jnp.dot(padT_ref[...], naT_ref[...], preferred_element_type=f32)

    # ---- e3nn BatchNorm (training-mode batch statistics, scalar irreps) --------------
    mu = jnp.mean(outT, axis=1, keepdims=True)
    cen = outT - mu
    var = jnp.mean(cen * cen, axis=1, keepdims=True)
    outT_ref[...] = cen * jax.lax.rsqrt(var + EPS_BN) * gamma + beta


@jax.jit
def tensor_product_conv(node_attr, edge_index, edge_attr, edge_sh, packed):
    """One fused Pallas launch; wrapper only does layout plumbing (transposes)."""
    n = node_attr.shape[0]
    ei = edge_index.astype(jnp.int32)           # [2, E], single buffer
    naT = node_attr.T                            # [C_in, N]
    eaT = edge_attr.T                            # [F_e, E]
    shT = edge_sh.T                              # [C_sh, E]

    vmem = pl.BlockSpec(memory_space=pltpu.MemorySpace.VMEM)
    outT = pl.pallas_call(
        _tpconv_kernel,
        out_shape=jax.ShapeDtypeStruct((C_OUT, n), jnp.float32),
        in_specs=[vmem] * 7,
        out_specs=vmem,
    )(ei, naT, eaT, shT, packed["wmat"], packed["cols"], packed["padT"])
    return outT.T                                # back to [N, C_out]


def init_params(key):
    k1, k2, k3, k4 = jax.random.split(key, 4)
    # PyTorch nn.Linear-style init (uniform in +-1/sqrt(fan_in))
    lim1 = 1.0 / FE ** 0.5
    lim2 = 1.0 / HID ** 0.5
    return {
        "w1": jax.random.uniform(k1, (FE, HID), jnp.float32, -lim1, lim1),
        "b1": jax.random.uniform(k2, (1, HID), jnp.float32, -lim1, lim1),
        "w2": jax.random.uniform(k3, (HID, WN), jnp.float32, -lim2, lim2),
        "b2": jax.random.uniform(k4, (1, WN), jnp.float32, -lim2, lim2),
        # e3nn BatchNorm affine init: weight = 1, bias = 0
        "gamma": jnp.ones((1, C_OUT), jnp.float32),
        "beta": jnp.zeros((1, C_OUT), jnp.float32),
    }


def pack_params(p):
    """Pack parameters into feature-major slabs with 8-row-aligned sections (done once)."""
    w1T = p["w1"].T                                # [HID, F_e]
    w2T = p["w2"].T                                # [M*C_out, HID]
    assert w1T.shape[1] == w2T.shape[1], "packing assumes F_e == hidden_features"
    assert HID % 8 == 0 and WN % 8 == 0 and C_OUT % 8 == 0, "slab sections must be 8-aligned"
    b1c = p["b1"].T                                # [HID, 1]
    b2c = p["b2"].T                                # [M*C_out, 1]
    gammac = p["gamma"].T                          # [C_out, 1]
    betac = p["beta"].T                            # [C_out, 1]
    # right-pad embedding for the residual: padT @ node_attr^T == F.pad(node_attr, (0, C_out-C_in))^T
    padT = jnp.eye(C_OUT, C_IN, dtype=jnp.float32)
    return {
        "wmat": jnp.concatenate([w1T, w2T], axis=0),                      # [HID+WN, 16]
        "cols": jnp.concatenate([b1c, b2c, gammac, betac], axis=0),       # [HID+WN+2*C_out, 1]
        "padT": padT,                                                     # [C_out, C_in]
    }


if __name__ == "__main__":
    key = jax.random.PRNGKey(0)
    kn, ke, ka, ks, kp = jax.random.split(key, 5)

    node_attr = jax.random.normal(kn, (N_NODES, C_IN), jnp.float32)
    edge_index = jax.random.randint(ke, (2, N_EDGES), 0, N_NODES, dtype=jnp.int32)
    edge_attr = jax.random.normal(ka, (N_EDGES, FE), jnp.float32)
    edge_sh = jax.random.normal(ks, (N_EDGES, C_SH), jnp.float32)
    params = init_params(kp)
    packed = pack_params(params)

    out = tensor_product_conv(node_attr, edge_index, edge_attr, edge_sh, packed)
    jax.block_until_ready(out)
    assert out.shape == (N_NODES, C_OUT) and out.dtype == jnp.float32
    print("KERNEL_OK")
</pallas_src>

<mosaic_0001>
module attributes {stable_mosaic.version = 11 : i64} {
  func.func @_tpconv_kernel(%arg0: memref<2x16xi32, #tpu.memory_space<vmem>>, %arg1: memref<4x8xf32, #tpu.memory_space<vmem>>, %arg2: memref<16x16xf32, #tpu.memory_space<vmem>>, %arg3: memref<1x16xf32, #tpu.memory_space<vmem>>, %arg4: memref<48x16xf32, #tpu.memory_space<vmem>>, %arg5: memref<64x1xf32, #tpu.memory_space<vmem>>, %arg6: memref<8x4xf32, #tpu.memory_space<vmem>>, %arg7: memref<8x8xf32, #tpu.memory_space<vmem>>) attributes {dimension_semantics = [], scalar_prefetch = 0 : i64, scratch_operands = 0 : i64, tpu.core_type = #tpu.core_type<tc>} {
    %c0 = arith.constant 0 : index
    %c0_0 = arith.constant 0 : index
    %0 = vector.load %arg4[%c0, %c0_0] : memref<48x16xf32, #tpu.memory_space<vmem>>, vector<16x16xf32>
    %c16 = arith.constant 16 : index
    %c0_1 = arith.constant 0 : index
    %1 = vector.load %arg4[%c16, %c0_1] : memref<48x16xf32, #tpu.memory_space<vmem>>, vector<32x16xf32>
    %c0_2 = arith.constant 0 : index
    %c0_3 = arith.constant 0 : index
    %2 = vector.load %arg5[%c0_2, %c0_3] : memref<64x1xf32, #tpu.memory_space<vmem>>, vector<16x1xf32>
    %c16_4 = arith.constant 16 : index
    %c0_5 = arith.constant 0 : index
    %3 = vector.load %arg5[%c16_4, %c0_5] : memref<64x1xf32, #tpu.memory_space<vmem>>, vector<32x1xf32>
    %c48 = arith.constant 48 : index
    %c0_6 = arith.constant 0 : index
    %4 = vector.load %arg5[%c48, %c0_6] : memref<64x1xf32, #tpu.memory_space<vmem>>, vector<8x1xf32>
    %c56 = arith.constant 56 : index
    %c0_7 = arith.constant 0 : index
    %5 = vector.load %arg5[%c56, %c0_7] : memref<64x1xf32, #tpu.memory_space<vmem>>, vector<8x1xf32>
    %c0_8 = arith.constant 0 : index
    %c0_9 = arith.constant 0 : index
    %6 = vector.load %arg0[%c0_8, %c0_9] : memref<2x16xi32, #tpu.memory_space<vmem>>, vector<1x16xi32>
    %c1 = arith.constant 1 : index
    %c0_10 = arith.constant 0 : index
    %7 = vector.load %arg0[%c1, %c0_10] : memref<2x16xi32, #tpu.memory_space<vmem>>, vector<1x16xi32>
    %8 = tpu.iota {dimensions = array<i32: 0>} : vector<8x16xi32>
    %9 = vector.broadcast %7 : vector<1x16xi32> to vector<8x16xi32>
    %10 = arith.cmpi eq, %8, %9 : vector<8x16xi32>
    %11 = arith.extui %10 : vector<8x16xi1> to vector<8x16xi32>
    %12 = arith.sitofp %11 : vector<8x16xi32> to vector<8x16xf32>
    %13 = vector.broadcast %6 : vector<1x16xi32> to vector<8x16xi32>
    %14 = arith.cmpi eq, %8, %13 : vector<8x16xi32>
    %15 = arith.extui %14 : vector<8x16xi1> to vector<8x16xi32>
    %16 = arith.sitofp %15 : vector<8x16xi32> to vector<8x16xf32>
    %c0_11 = arith.constant 0 : index
    %c0_12 = arith.constant 0 : index
    %17 = vector.load %arg1[%c0_11, %c0_12] : memref<4x8xf32, #tpu.memory_space<vmem>>, vector<4x8xf32>
    %cst = arith.constant dense<0.000000e+00> : vector<4x16xf32>
    %18 = tpu.matmul %17, %12, %cst {dimension_numbers = #tpu.dot_dimension_numbers<[1], [0], [0], [1], [0, 0, 1, 1], [], []>} : vector<4x8xf32>, vector<8x16xf32>, vector<4x16xf32> -> vector<4x16xf32>
    %c0_13 = arith.constant 0 : index
    %c0_14 = arith.constant 0 : index
    %19 = vector.load %arg2[%c0_13, %c0_14] : memref<16x16xf32, #tpu.memory_space<vmem>>, vector<16x16xf32>
    %cst_15 = arith.constant dense<0.000000e+00> : vector<16x16xf32>
    %20 = tpu.matmul %0, %19, %cst_15 {dimension_numbers = #tpu.dot_dimension_numbers<[1], [0], [0], [1], [0, 0, 1, 1], [], []>} : vector<16x16xf32>, vector<16x16xf32>, vector<16x16xf32> -> vector<16x16xf32>
    %21 = vector.broadcast %2 : vector<16x1xf32> to vector<16x16xf32>
    %22 = arith.addf %20, %21 : vector<16x16xf32>
    %cst_16 = arith.constant 0.000000e+00 : f32
    %23 = vector.broadcast %cst_16 : f32 to vector<16x16xf32>
    %24 = arith.maximumf %22, %23 : vector<16x16xf32>
    %cst_17 = arith.constant dense<0.000000e+00> : vector<32x16xf32>
    %25 = tpu.matmul %1, %24, %cst_17 {dimension_numbers = #tpu.dot_dimension_numbers<[1], [0], [0], [1], [0, 0, 1, 1], [], []>} : vector<32x16xf32>, vector<16x16xf32>, vector<32x16xf32> -> vector<32x16xf32>
    %26 = vector.broadcast %3 : vector<32x1xf32> to vector<32x16xf32>
    %27 = arith.addf %25, %26 : vector<32x16xf32>
    %c0_18 = arith.constant 0 : index
    %c0_19 = arith.constant 0 : index
    %28 = vector.load %arg3[%c0_18, %c0_19] : memref<1x16xf32, #tpu.memory_space<vmem>>, vector<1x16xf32>
    %29 = vector.broadcast %28 : vector<1x16xf32> to vector<4x16xf32>
    %30 = arith.mulf %18, %29 : vector<4x16xf32>
    %31 = vector.extract_strided_slice %30 {offsets = [0, 0], sizes = [1, 16], strides = [1, 1]} : vector<4x16xf32> to vector<1x16xf32>
    %32 = vector.extract_strided_slice %27 {offsets = [0, 0], sizes = [8, 16], strides = [1, 1]} : vector<32x16xf32> to vector<8x16xf32>
    %33 = vector.broadcast %31 : vector<1x16xf32> to vector<8x16xf32>
    %34 = arith.mulf %33, %32 : vector<8x16xf32>
    %35 = vector.extract_strided_slice %30 {offsets = [1, 0], sizes = [1, 16], strides = [1, 1]} : vector<4x16xf32> to vector<1x16xf32>
    %36 = vector.extract_strided_slice %27 {offsets = [8, 0], sizes = [8, 16], strides = [1, 1]} : vector<32x16xf32> to vector<8x16xf32>
    %37 = vector.broadcast %35 : vector<1x16xf32> to vector<8x16xf32>
    %38 = arith.mulf %37, %36 : vector<8x16xf32>
    %39 = arith.addf %34, %38 : vector<8x16xf32>
    %40 = vector.extract_strided_slice %30 {offsets = [2, 0], sizes = [1, 16], strides = [1, 1]} : vector<4x16xf32> to vector<1x16xf32>
    %41 = vector.extract_strided_slice %27 {offsets = [16, 0], sizes = [8, 16], strides = [1, 1]} : vector<32x16xf32> to vector<8x16xf32>
    %42 = vector.broadcast %40 : vector<1x16xf32> to vector<8x16xf32>
    %43 = arith.mulf %42, %41 : vector<8x16xf32>
    %44 = arith.addf %39, %43 : vector<8x16xf32>
    %45 = vector.extract_strided_slice %30 {offsets = [3, 0], sizes = [1, 16], strides = [1, 1]} : vector<4x16xf32> to vector<1x16xf32>
    %46 = vector.extract_strided_slice %27 {offsets = [24, 0], sizes = [8, 16], strides = [1, 1]} : vector<32x16xf32> to vector<8x16xf32>
    %47 = vector.broadcast %45 : vector<1x16xf32> to vector<8x16xf32>
    %48 = arith.mulf %47, %46 : vector<8x16xf32>
    %49 = arith.addf %44, %48 : vector<8x16xf32>
    %cst_20 = arith.constant 5.000000e-01 : f32
    %50 = vector.broadcast %cst_20 : f32 to vector<8x16xf32>
    %51 = arith.mulf %49, %50 : vector<8x16xf32>
    %cst_21 = arith.constant dense<0.000000e+00> : vector<8x8xf32>
    %52 = tpu.matmul %51, %16, %cst_21 {dimension_numbers = #tpu.dot_dimension_numbers<[1], [1], [0], [0], [0, 0, 1, 0], [], []>} : vector<8x16xf32>, vector<8x16xf32>, vector<8x8xf32> -> vector<8x8xf32>
    %cst_22 = arith.constant 1.000000e+00 : f32
    %53 = vector.broadcast %cst_22 : f32 to vector<1x16xf32>
    %cst_23 = arith.constant dense<0.000000e+00> : vector<1x8xf32>
    %54 = tpu.matmul %53, %16, %cst_23 {dimension_numbers = #tpu.dot_dimension_numbers<[1], [1], [0], [0], [0, 0, 1, 0], [], []>} : vector<1x16xf32>, vector<8x16xf32>, vector<1x8xf32> -> vector<1x8xf32>
    %cst_24 = arith.constant 1.000000e+00 : f32
    %55 = vector.broadcast %cst_24 : f32 to vector<1x8xf32>
    %56 = arith.maximumf %54, %55 : vector<1x8xf32>
    %57 = vector.broadcast %56 : vector<1x8xf32> to vector<8x8xf32>
    %58 = arith.divf %52, %57 : vector<8x8xf32>
    %c0_25 = arith.constant 0 : index
    %c0_26 = arith.constant 0 : index
    %59 = vector.load %arg6[%c0_25, %c0_26] : memref<8x4xf32, #tpu.memory_space<vmem>>, vector<8x4xf32>
    %c0_27 = arith.constant 0 : index
    %c0_28 = arith.constant 0 : index
    %60 = vector.load %arg1[%c0_27, %c0_28] : memref<4x8xf32, #tpu.memory_space<vmem>>, vector<4x8xf32>
    %cst_29 = arith.constant dense<0.000000e+00> : vector<8x8xf32>
    %61 = tpu.matmul %59, %60, %cst_29 {dimension_numbers = #tpu.dot_dimension_numbers<[1], [0], [0], [1], [0, 0, 1, 1], [], []>} : vector<8x4xf32>, vector<4x8xf32>, vector<8x8xf32> -> vector<8x8xf32>
    %62 = arith.addf %58, %61 : vector<8x8xf32>
    %cst_30 = arith.constant dense<0.000000e+00> : vector<8xf32>
    %63 = vector.multi_reduction <add>, %62, %cst_30 [1] : vector<8x8xf32> to vector<8xf32>
    %64 = vector.shape_cast %63 : vector<8xf32> to vector<8x1xf32>
    %cst_31 = arith.constant 8.000000e+00 : f32
    %65 = vector.broadcast %cst_31 : f32 to vector<8x1xf32>
    %66 = arith.divf %64, %65 : vector<8x1xf32>
    %67 = vector.broadcast %66 : vector<8x1xf32> to vector<8x8xf32>
    %68 = arith.subf %62, %67 : vector<8x8xf32>
    %69 = arith.mulf %68, %68 : vector<8x8xf32>
    %cst_32 = arith.constant dense<0.000000e+00> : vector<8xf32>
    %70 = vector.multi_reduction <add>, %69, %cst_32 [1] : vector<8x8xf32> to vector<8xf32>
    %71 = vector.shape_cast %70 : vector<8xf32> to vector<8x1xf32>
    %cst_33 = arith.constant 8.000000e+00 : f32
    %72 = vector.broadcast %cst_33 : f32 to vector<8x1xf32>
    %73 = arith.divf %71, %72 : vector<8x1xf32>
    %cst_34 = arith.constant 9.99999974E-6 : f32
    %74 = vector.broadcast %cst_34 : f32 to vector<8x1xf32>
    %75 = arith.addf %73, %74 : vector<8x1xf32>
    %76 = math.rsqrt %75 : vector<8x1xf32>
    %77 = vector.broadcast %76 : vector<8x1xf32> to vector<8x8xf32>
    %78 = arith.mulf %68, %77 : vector<8x8xf32>
    %79 = vector.broadcast %4 : vector<8x1xf32> to vector<8x8xf32>
    %80 = arith.mulf %78, %79 : vector<8x8xf32>
    %81 = vector.broadcast %5 : vector<8x1xf32> to vector<8x8xf32>
    %82 = arith.addf %80, %81 : vector<8x8xf32>
    %c0_35 = arith.constant 0 : index
    %c0_36 = arith.constant 0 : index
    %83 = vector.load %arg7[%c0_35, %c0_36] : memref<8x8xf32, #tpu.memory_space<vmem>>, vector<8x8xf32>
    tpu.vector_store %arg7[%c0_35, %c0_36], %82 {strides = array<i32>} : memref<8x8xf32, #tpu.memory_space<vmem>>, vector<8x8xf32>,
    return
  }
}

</mosaic_0001>

<llo_original>
// kernel: tensor_product_conv.1
$region0: #{tensor_product_conv.1}
  #allocation0 [shape = 'u32[]', space=smem, size = 0x4, offset = 0x4, fixed_abs, tag = 'smem constant byte address 0x4 - core index']
  #allocation1 [shape = 'u32[144,128]{1,0:T(1,128)}', space=vmem, size = 0x12000, scoped, tag = 'internal scratch']
  %s0 = inlined_call_operand.vmem [shape: s32[2,16], index: 0, kind: input, shape index: {}]
  %s1 = inlined_call_operand.vmem [shape: f32[4,8], index: 1, kind: input, shape index: {}]
  %s2 = inlined_call_operand.vmem [shape: f32[16,16], index: 2, kind: input, shape index: {}]
  %s3 = inlined_call_operand.vmem [shape: f32[1,16], index: 3, kind: input, shape index: {}]
  %s4 = inlined_call_operand.vmem [shape: f32[48,16], index: 4, kind: input, shape index: {}]
  %s5 = inlined_call_operand.vmem [shape: f32[64,1], index: 5, kind: input, shape index: {}]
  %s6 = inlined_call_operand.vmem [shape: f32[8,4], index: 6, kind: input, shape index: {}]
  %s7 = inlined_call_operand.vmem [shape: f32[8,8], index: 7, kind: output, shape index: {}]
  %s8 = sld [smem:[#allocation0]]
  $region38: #{tensor_product_conv.1} parent=0
    _
  %s10 = ssub.s32 1, %s8
  %s11 = scalar_select 0, %s10, %s8
  // Predicated region
  $region2: #{tensor_product_conv.1} parent=0 // pred_check
    _
  $region3: #{tensor_product_conv.1} parent=0 // pred_check_branch
    %13 = sbr.rel (0) target = $region5
  $region4: #{tensor_product_conv.1} parent=0 // pred_region
    _
  $region5: #{tensor_product_conv.1} parent=0 // pred_fallthru
    _
  // Predicated region
  $region6: #{tensor_product_conv.1} parent=0 // pred_check
    _
  $region7: #{tensor_product_conv.1} parent=0 // pred_check_branch
    %15 = sbr.rel (0) target = $region9
  $region8: #{tensor_product_conv.1} parent=0 // pred_region
    _
  $region9: #{tensor_product_conv.1} parent=0 // pred_fallthru
    _
  // Predicated region
  $region10: #{tensor_product_conv.1} parent=0 // pred_check
    _
  $region11: #{tensor_product_conv.1} parent=0 // pred_check_branch
    %17 = sbr.rel (0) target = $region13
  $region12: #{tensor_product_conv.1} parent=0 // pred_region
    _
  $region13: #{tensor_product_conv.1} parent=0 // pred_fallthru
    _
  // Predicated region
  $region14: #{tensor_product_conv.1} parent=0 // pred_check
    _
  $region15: #{tensor_product_conv.1} parent=0 // pred_check_branch
    %19 = sbr.rel (0) target = $region17
  $region16: #{tensor_product_conv.1} parent=0 // pred_region
    _
  $region17: #{tensor_product_conv.1} parent=0 // pred_fallthru
    _
  // Predicated region
  $region18: #{tensor_product_conv.1} parent=0 // pred_check
    _
  $region19: #{tensor_product_conv.1} parent=0 // pred_check_branch
    %21 = sbr.rel (0) target = $region21
  $region20: #{tensor_product_conv.1} parent=0 // pred_region
    _
  $region21: #{tensor_product_conv.1} parent=0 // pred_fallthru
    _
  // Predicated region
  $region22: #{tensor_product_conv.1} parent=0 // pred_check
    _
  $region23: #{tensor_product_conv.1} parent=0 // pred_check_branch
    %23 = sbr.rel (0) target = $region25
  $region24: #{tensor_product_conv.1} parent=0 // pred_region
    _
  $region25: #{tensor_product_conv.1} parent=0 // pred_fallthru
    _
  // Predicated region
  $region26: #{tensor_product_conv.1} parent=0 // pred_check
    _
  $region27: #{tensor_product_conv.1} parent=0 // pred_check_branch
    %25 = sbr.rel (0) target = $region29
  $region28: #{tensor_product_conv.1} parent=0 // pred_region
    _
  $region29: #{tensor_product_conv.1} parent=0 // pred_fallthru
    _
  %v26 = vld [vmem:[%s4] sm:$0xff]
  %v27 = vld [vmem:[%s4 + $0x8] sm:$0xff]
  %v28 = vld [vmem:[%s4 + $0x10] sm:$0xff]
  %v29 = vld [vmem:[%s4 + $0x18] sm:$0xff]
  %v30 = vld [vmem:[%s4 + $0x20] sm:$0xff]
  %v31 = vld [vmem:[%s4 + $0x28] sm:$0xff]
  %v32 = vld [vmem:[%s5] sm:$0xff]
  %v33 = vld [vmem:[%s5 + $0x8] sm:$0xff]
  %v34 = vld [vmem:[%s5 + $0x10] sm:$0xff]
  %v35 = vld [vmem:[%s5 + $0x18] sm:$0xff]
  %v36 = vld [vmem:[%s5 + $0x20] sm:$0xff]
  %v37 = vld [vmem:[%s5 + $0x28] sm:$0xff]
  %v38 = vld [vmem:[%s5 + $0x30] sm:$0xff]
  %v39 = vld [vmem:[%s5 + $0x38] sm:$0xff]
  %v40 = vld [vmem:[%s0] sm:$0x1]
  %v41 = vld [vmem:[%s0 + $0x1] sm:$0x1]
  %v42 = vlaneseq
  %v43 = vshrl.u32 %v42, 7
  %v44 = vlaneseq
  %v45 = vshrl.u32 %v44, 7
  %v46 = vsub.s32 0, %v45
  %v47 = vrot.slane %v41, %v46
  %vm48 = vcmp.eq.s32.totalorder %v43, %v47
  %v49 = vsel %vm48, 1, 0
  %v50 = vcvt.s32.f32 %v49
  %v51 = vlaneseq
  %v52 = vshrl.u32 %v51, 7
  %v53 = vsub.s32 0, %v52
  %v54 = vrot.slane %v40, %v53
  %vm55 = vcmp.eq.s32.totalorder %v43, %v54
  %v56 = vsel %vm55, 1, 0
  %v57 = vcvt.s32.f32 %v56
  %v58 = vld [vmem:[%s1] sm:$0xf]
  %vm59 = vcmask 64512
  %v61 = vsel %vm59, %v58, 0
  %63 = vmatprep.subr.mxu0 0.0
  %64 = vmatpush1.msra.mxu0 %v50
  %65 = vmatprep.subr.mxu0 0.0
  %66 = vmatpush1.msra.mxu0 0.0
  %67 = vmatprep.subr.mxu0 0.0
  %68 = vmatpush1.msra.mxu0 0.0
  %69 = vmatprep.subr.mxu0 0.0
  %70 = vmatpush1.msra.mxu0 0.0
  %71 = vmatprep.subr.mxu0 0.0
  %72 = vmatpush1.msra.mxu0 0.0
  %73 = vmatprep.subr.mxu0 0.0
  %74 = vmatpush1.msra.mxu0 0.0
  %75 = vmatprep.subr.mxu0 0.0
  %76 = vmatpush1.msra.mxu0 0.0
  %77 = vmatprep.subr.mxu0 0.0
  %78 = vmatpush1.msra.mxu0 0.0
  %79 = vmatprep.subr.mxu0 0.0
  %80 = vmatpush1.msra.mxu0 0.0
  %81 = vmatprep.subr.mxu0 0.0
  %82 = vmatpush1.msra.mxu0 0.0
  %83 = vmatprep.subr.mxu0 0.0
  %84 = vmatpush1.msra.mxu0 0.0
  %85 = vmatprep.subr.mxu0 0.0
  %86 = vmatpush1.msra.mxu0 0.0
  %87 = vmatprep.subr.mxu0 0.0
  %88 = vmatpush1.msra.mxu0 0.0
  %89 = vmatprep.subr.mxu0 0.0
  %90 = vmatpush1.msra.mxu0 0.0
  %91 = vmatprep.subr.mxu0 0.0
  %92 = vmatpush1.msra.mxu0 0.0
  %93 = vmatprep.subr.mxu0 0.0
  %94 = vmatpush1.msra.mxu0 0.0
  %95 = vmatprep.subr.mxu0 0.0
  %96 = vmatpush1.msra.mxu0 0.0
  %97 = vmatprep.subr.mxu0 0.0
  %98 = vmatpush1.msra.mxu0 0.0
  %99 = vmatprep.subr.mxu0 0.0
  %100 = vmatpush1.msra.mxu0 0.0
  %101 = vmatprep.subr.mxu0 0.0
  %102 = vmatpush1.msra.mxu0 0.0
  %103 = vmatprep.subr.mxu0 0.0
  %104 = vmatpush1.msra.mxu0 0.0
  %105 = vmatprep.subr.mxu0 0.0
  %106 = vmatpush1.msra.mxu0 0.0
  %107 = vmatprep.subr.mxu0 0.0
  %108 = vmatpush1.msra.mxu0 0.0
  %109 = vmatprep.subr.mxu0 0.0
  %110 = vmatpush1.msra.mxu0 0.0
  %111 = vmatprep.subr.mxu0 0.0
  %112 = vmatpush1.msra.mxu0 0.0
  %113 = vmatprep.subr.mxu0 0.0
  %114 = vmatpush1.msra.mxu0 0.0
  %115 = vmatprep.subr.mxu0 0.0
  %116 = vmatpush1.msra.mxu0 0.0
  %117 = vmatprep.subr.mxu0 0.0
  %118 = vmatpush1.msra.mxu0 0.0
  %119 = vmatprep.subr.mxu0 0.0
  %120 = vmatpush1.msra.mxu0 0.0
  %121 = vmatprep.subr.mxu0 0.0
  %122 = vmatpush1.msra.mxu0 0.0
  %123 = vmatprep.subr.mxu0 0.0
  %124 = vmatpush1.msra.mxu0 0.0
  %125 = vmatprep.subr.mxu0 0.0
  %126 = vmatpush1.msra.mxu0 0.0
  %127 = vmatprep.mubr.f32.mxu0 0.0
  %128 = vmatmul.mubr.f32.gmra.mrb[0].mxu0 %v61
  %v129 = vpop.f32.mrb[0].mxu0
  %v130 = vadd.f32 0.0, %v129
  %v131 = vpop.f32.mrb[0].mxu0
  %132 = vdwg.mxu0
  %v133 = vld [vmem:[%s2] sm:$0xff]
  %v134 = vld [vmem:[%s2 + $0x8] sm:$0xff]
  %136 = vset.pattern.permute.xlu0 0
  %137 = vperm.xlu0 %136, %v32
  %v138 = vpop.permute.xlu0 %137
  %141 = vset.pattern.permute.xlu0 0
  %142 = vperm.xlu0 %141, %v33
  %v143 = vpop.permute.xlu0 %142
  %vm145 = vcmask 130048
  %v147 = vsel %vm145, %v26, 0
  %v150 = vsel %vm145, %v27, 0
  %152 = vmatprep.subr.mxu0 0.0
  %153 = vmatpush1.msra.mxu0 %v133
  %154 = vmatprep.subr.mxu0 0.0
  %155 = vmatpush1.msra.mxu0 %v134
  %156 = vmatprep.subr.mxu0 0.0
  %157 = vmatpush1.msra.mxu0 0.0
  %158 = vmatprep.subr.mxu0 0.0
  %159 = vmatpush1.msra.mxu0 0.0
  %160 = vmatprep.subr.mxu0 0.0
  %161 = vmatpush1.msra.mxu0 0.0
  %162 = vmatprep.subr.mxu0 0.0
  %163 = vmatpush1.msra.mxu0 0.0
  %164 = vmatprep.subr.mxu0 0.0
  %165 = vmatpush1.msra.mxu0 0.0
  %166 = vmatprep.subr.mxu0 0.0
  %167 = vmatpush1.msra.mxu0 0.0
  %168 = vmatprep.subr.mxu0 0.0
  %169 = vmatpush1.msra.mxu0 0.0
  %170 = vmatprep.subr.mxu0 0.0
  %171 = vmatpush1.msra.mxu0 0.0
  %172 = vmatprep.subr.mxu0 0.0
  %173 = vmatpush1.msra.mxu0 0.0
  %174 = vmatprep.subr.mxu0 0.0
  %175 = vmatpush1.msra.mxu0 0.0
  %176 = vmatprep.subr.mxu0 0.0
  %177 = vmatpush1.msra.mxu0 0.0
  %178 = vmatprep.subr.mxu0 0.0
  %179 = vmatpush1.msra.mxu0 0.0
  %180 = vmatprep.subr.mxu0 0.0
  %181 = vmatpush1.msra.mxu0 0.0
  %182 = vmatprep.subr.mxu0 0.0
  %183 = vmatpush1.msra.mxu0 0.0
  %184 = vmatprep.subr.mxu0 0.0
  %185 = vmatpush1.msra.mxu0 0.0
  %186 = vmatprep.subr.mxu0 0.0
  %187 = vmatpush1.msra.mxu0 0.0
  %188 = vmatprep.subr.mxu0 0.0
  %189 = vmatpush1.msra.mxu0 0.0
  %190 = vmatprep.subr.mxu0 0.0
  %191 = vmatpush1.msra.mxu0 0.0
  %192 = vmatprep.subr.mxu0 0.0
  %193 = vmatpush1.msra.mxu0 0.0
  %194 = vmatprep.subr.mxu0 0.0
  %195 = vmatpush1.msra.mxu0 0.0
  %196 = vmatprep.subr.mxu0 0.0
  %197 = vmatpush1.msra.mxu0 0.0
  %198 = vmatprep.subr.mxu0 0.0
  %199 = vmatpush1.msra.mxu0 0.0
  %200 = vmatprep.subr.mxu0 0.0
  %201 = vmatpush1.msra.mxu0 0.0
  %202 = vmatprep.subr.mxu0 0.0
  %203 = vmatpush1.msra.mxu0 0.0
  %204 = vmatprep.subr.mxu0 0.0
  %205 = vmatpush1.msra.mxu0 0.0
  %206 = vmatprep.subr.mxu0 0.0
  %207 = vmatpush1.msra.mxu0 0.0
  %208 = vmatprep.subr.mxu0 0.0
  %209 = vmatpush1.msra.mxu0 0.0
  %210 = vmatprep.subr.mxu0 0.0
  %211 = vmatpush1.msra.mxu0 0.0
  %212 = vmatprep.subr.mxu0 0.0
  %213 = vmatpush1.msra.mxu0 0.0
  %214 = vmatprep.subr.mxu0 0.0
  %215 = vmatpush1.msra.mxu0 0.0
  %216 = vmatprep.mubr.f32.mxu0 0.0
  %217 = vmatmul.mubr.f32.gmra.mrb[0].mxu0 %v147
  %v218 = vpop.f32.mrb[0].mxu0
  %v219 = vadd.f32 %v138, %v218
  %v220 = vpop.f32.mrb[0].mxu0
  %221 = vmatprep.mubr.f32.mxu0 0.0
  %222 = vmatmul.mubr.f32.gmra.mrb[0].mxu0 %v150
  %v223 = vpop.f32.mrb[0].mxu0
  %v224 = vadd.f32 %v143, %v223
  %v225 = vpop.f32.mrb[0].mxu0
  %226 = vdwg.mxu0
  %v227 = vmax.f32 %v219, 0.0
  %v228 = vmax.f32 %v224, 0.0
  %230 = vset.pattern.permute.xlu0 0
  %231 = vperm.xlu0 %230, %v34
  %v232 = vpop.permute.xlu0 %231
  %235 = vset.pattern.permute.xlu0 0
  %236 = vperm.xlu0 %235, %v35
  %v237 = vpop.permute.xlu0 %236
  %240 = vset.pattern.permute.xlu0 0
  %241 = vperm.xlu0 %240, %v36
  %v242 = vpop.permute.xlu0 %241
  %245 = vset.pattern.permute.xlu0 0
  %246 = vperm.xlu0 %245, %v37
  %v247 = vpop.permute.xlu0 %246
  %v250 = vsel %vm145, %v28, 0
  %v253 = vsel %vm145, %v29, 0
  %v256 = vsel %vm145, %v30, 0
  %v259 = vsel %vm145, %v31, 0
  %261 = vmatprep.subr.mxu0 0.0
  %262 = vmatpush1.msra.mxu0 %v227
  %263 = vmatprep.subr.mxu0 0.0
  %264 = vmatpush1.msra.mxu0 %v228
  %265 = vmatprep.subr.mxu0 0.0
  %266 = vmatpush1.msra.mxu0 0.0
  %267 = vmatprep.subr.mxu0 0.0
  %268 = vmatpush1.msra.mxu0 0.0
  %269 = vmatprep.subr.mxu0 0.0
  %270 = vmatpush1.msra.mxu0 0.0
  %271 = vmatprep.subr.mxu0 0.0
  %272 = vmatpush1.msra.mxu0 0.0
  %273 = vmatprep.subr.mxu0 0.0
  %274 = vmatpush1.msra.mxu0 0.0
  %275 = vmatprep.subr.mxu0 0.0
  %276 = vmatpush1.msra.mxu0 0.0
  %277 = vmatprep.subr.mxu0 0.0
  %278 = vmatpush1.msra.mxu0 0.0
  %279 = vmatprep.subr.mxu0 0.0
  %280 = vmatpush1.msra.mxu0 0.0
  %281 = vmatprep.subr.mxu0 0.0
  %282 = vmatpush1.msra.mxu0 0.0
  %283 = vmatprep.subr.mxu0 0.0
  %284 = vmatpush1.msra.mxu0 0.0
  %285 = vmatprep.subr.mxu0 0.0
  %286 = vmatpush1.msra.mxu0 0.0
  %287 = vmatprep.subr.mxu0 0.0
  %288 = vmatpush1.msra.mxu0 0.0
  %289 = vmatprep.subr.mxu0 0.0
  %290 = vmatpush1.msra.mxu0 0.0
  %291 = vmatprep.subr.mxu0 0.0
  %292 = vmatpush1.msra.mxu0 0.0
  %293 = vmatprep.subr.mxu0 0.0
  %294 = vmatpush1.msra.mxu0 0.0
  %295 = vmatprep.subr.mxu0 0.0
  %296 = vmatpush1.msra.mxu0 0.0
  %297 = vmatprep.subr.mxu0 0.0
  %298 = vmatpush1.msra.mxu0 0.0
  %299 = vmatprep.subr.mxu0 0.0
  %300 = vmatpush1.msra.mxu0 0.0
  %301 = vmatprep.subr.mxu0 0.0
  %302 = vmatpush1.msra.mxu0 0.0
  %303 = vmatprep.subr.mxu0 0.0
  %304 = vmatpush1.msra.mxu0 0.0
  %305 = vmatprep.subr.mxu0 0.0
  %306 = vmatpush1.msra.mxu0 0.0
  %307 = vmatprep.subr.mxu0 0.0
  %308 = vmatpush1.msra.mxu0 0.0
  %309 = vmatprep.subr.mxu0 0.0
  %310 = vmatpush1.msra.mxu0 0.0
  %311 = vmatprep.subr.mxu0 0.0
  %312 = vmatpush1.msra.mxu0 0.0
  %313 = vmatprep.subr.mxu0 0.0
  %314 = vmatpush1.msra.mxu0 0.0
  %315 = vmatprep.subr.mxu0 0.0
  %316 = vmatpush1.msra.mxu0 0.0
  %317 = vmatprep.subr.mxu0 0.0
  %318 = vmatpush1.msra.mxu0 0.0
  %319 = vmatprep.subr.mxu0 0.0
  %320 = vmatpush1.msra.mxu0 0.0
  %321 = vmatprep.subr.mxu0 0.0
  %322 = vmatpush1.msra.mxu0 0.0
  %323 = vmatprep.subr.mxu0 0.0
  %324 = vmatpush1.msra.mxu0 0.0
  %325 = vmatprep.mubr.f32.mxu0 0.0
  %326 = vmatmul.mubr.f32.gmra.mrb[0].mxu0 %v250
  %v327 = vpop.f32.mrb[0].mxu0
  %v328 = vadd.f32 %v232, %v327
  %v329 = vpop.f32.mrb[0].mxu0
  %330 = vmatprep.mubr.f32.mxu0 0.0
  %331 = vmatmul.mubr.f32.gmra.mrb[0].mxu0 %v253
  %v332 = vpop.f32.mrb[0].mxu0
  %v333 = vadd.f32 %v237, %v332
  %v334 = vpop.f32.mrb[0].mxu0
  %335 = vmatprep.mubr.f32.mxu0 0.0
  %336 = vmatmul.mubr.f32.gmra.mrb[0].mxu0 %v256
  %v337 = vpop.f32.mrb[0].mxu0
  %v338 = vadd.f32 %v242, %v337
  %v339 = vpop.f32.mrb[0].mxu0
  %340 = vmatprep.mubr.f32.mxu0 0.0
  %341 = vmatmul.mubr.f32.gmra.mrb[0].mxu0 %v259
  %v342 = vpop.f32.mrb[0].mxu0
  %v343 = vadd.f32 %v247, %v342
  %v344 = vpop.f32.mrb[0].mxu0
  %345 = vdwg.mxu0
  %v346 = vld [vmem:[%s3] sm:$0x1]
  %v348 = vlaneseq
  %v349 = vshrl.u32 %v348, 7
  %v350 = vsub.s32 0, %v349
  %v351 = vrot.slane %v346, %v350
  %v353 = vmul.f32 %v130, %v351
  %v354 = vlaneseq
  %v355 = vshrl.u32 %v354, 7
  %v356 = vsub.s32 0, %v355
  %v357 = vrot.slane %v353, %v356
  %v358 = vmul.f32 %v357, %v328
  %v359 = vlaneseq
  %v360 = vshrl.u32 %v359, 7
  %v361 = vsub.s32 1, %v360
  %v362 = vrot.slane %v353, %v361
  %v363 = vmul.f32 %v362, %v333
  %v364 = vadd.f32 %v358, %v363
  %v365 = vlaneseq
  %v366 = vshrl.u32 %v365, 7
  %v367 = vsub.s32 2, %v366
  %v368 = vrot.slane %v353, %v367
  %v369 = vmul.f32 %v368, %v338
  %v370 = vadd.f32 %v364, %v369
  %v371 = vlaneseq
  %v372 = vshrl.u32 %v371, 7
  %v373 = vsub.s32 3, %v372
  %v374 = vrot.slane %v353, %v373
  %v375 = vmul.f32 %v374, %v343
  %v376 = vadd.f32 %v370, %v375
  %v377 = vmul.f32 %v376, 0.5
  %v379 = vsel %vm145, %v377, 0
  %v382 = vsel %vm145, %v57, 0
  %384 = vmatprep.subr.mxu0 0.0
  %385 = vmatpush1.xpose.msra.mxu0 %v382
  %386 = vmatprep.subr.mxu0 0.0
  %387 = vmatpush1.xpose.msra.mxu0 0.0
  %388 = vmatprep.subr.mxu0 0.0
  %389 = vmatpush1.xpose.msra.mxu0 0.0
  %390 = vmatprep.subr.mxu0 0.0
  %391 = vmatpush1.xpose.msra.mxu0 0.0
  %392 = vmatprep.subr.mxu0 0.0
  %393 = vmatpush1.xpose.msra.mxu0 0.0
  %394 = vmatprep.subr.mxu0 0.0
  %395 = vmatpush1.xpose.msra.mxu0 0.0
  %396 = vmatprep.subr.mxu0 0.0
  %397 = vmatpush1.xpose.msra.mxu0 0.0
  %398 = vmatprep.subr.mxu0 0.0
  %399 = vmatpush1.xpose.msra.mxu0 0.0
  %400 = vmatprep.subr.mxu0 0.0
  %401 = vmatpush1.xpose.msra.mxu0 0.0
  %402 = vmatprep.subr.mxu0 0.0
  %403 = vmatpush1.xpose.msra.mxu0 0.0
  %404 = vmatprep.subr.mxu0 0.0
  %405 = vmatpush1.xpose.msra.mxu0 0.0
  %406 = vmatprep.subr.mxu0 0.0
  %407 = vmatpush1.xpose.msra.mxu0 0.0
  %408 = vmatprep.subr.mxu0 0.0
  %409 = vmatpush1.xpose.msra.mxu0 0.0
  %410 = vmatprep.subr.mxu0 0.0
  %411 = vmatpush1.xpose.msra.mxu0 0.0
  %412 = vmatprep.subr.mxu0 0.0
  %413 = vmatpush1.xpose.msra.mxu0 0.0
  %414 = vmatprep.subr.mxu0 0.0
  %415 = vmatpush1.xpose.msra.mxu0 0.0
  %416 = vmatprep.subr.mxu0 0.0
  %417 = vmatpush1.xpose.msra.mxu0 0.0
  %418 = vmatprep.subr.mxu0 0.0
  %419 = vmatpush1.xpose.msra.mxu0 0.0
  %420 = vmatprep.subr.mxu0 0.0
  %421 = vmatpush1.xpose.msra.mxu0 0.0
  %422 = vmatprep.subr.mxu0 0.0
  %423 = vmatpush1.xpose.msra.mxu0 0.0
  %424 = vmatprep.subr.mxu0 0.0
  %425 = vmatpush1.xpose.msra.mxu0 0.0
  %426 = vmatprep.subr.mxu0 0.0
  %427 = vmatpush1.xpose.msra.mxu0 0.0
  %428 = vmatprep.subr.mxu0 0.0
  %429 = vmatpush1.xpose.msra.mxu0 0.0
  %430 = vmatprep.subr.mxu0 0.0
  %431 = vmatpush1.xpose.msra.mxu0 0.0
  %432 = vmatprep.subr.mxu0 0.0
  %433 = vmatpush1.xpose.msra.mxu0 0.0
  %434 = vmatprep.subr.mxu0 0.0
  %435 = vmatpush1.xpose.msra.mxu0 0.0
  %436 = vmatprep.subr.mxu0 0.0
  %437 = vmatpush1.xpose.msra.mxu0 0.0
  %438 = vmatprep.subr.mxu0 0.0
  %439 = vmatpush1.xpose.msra.mxu0 0.0
  %440 = vmatprep.subr.mxu0 0.0
  %441 = vmatpush1.xpose.msra.mxu0 0.0
  %442 = vmatprep.subr.mxu0 0.0
  %443 = vmatpush1.xpose.msra.mxu0 0.0
  %444 = vmatprep.subr.mxu0 0.0
  %445 = vmatpush1.xpose.msra.mxu0 0.0
  %446 = vmatprep.subr.mxu0 0.0
  %447 = vmatpush1.xpose.msra.mxu0 0.0
  %448 = vmatprep.mubr.f32.mxu0 0.0
  %449 = vmatmul.mubr.f32.gmra.mrb[0].mxu0 %v379
  %v450 = vpop.f32.mrb[0].mxu0
  %v451 = vadd.f32 0.0, %v450
  %v452 = vpop.f32.mrb[0].mxu0
  %453 = vdwg.mxu0
  %v455 = vsel %vm145, 1.0, 0
  %457 = vmatprep.subr.mxu0 0.0
  %458 = vmatpush1.xpose.msra.mxu0 %v382
  %459 = vmatprep.subr.mxu0 0.0
  %460 = vmatpush1.xpose.msra.mxu0 0.0
  %461 = vmatprep.subr.mxu0 0.0
  %462 = vmatpush1.xpose.msra.mxu0 0.0
  %463 = vmatprep.subr.mxu0 0.0
  %464 = vmatpush1.xpose.msra.mxu0 0.0
  %465 = vmatprep.subr.mxu0 0.0
  %466 = vmatpush1.xpose.msra.mxu0 0.0
  %467 = vmatprep.subr.mxu0 0.0
  %468 = vmatpush1.xpose.msra.mxu0 0.0
  %469 = vmatprep.subr.mxu0 0.0
  %470 = vmatpush1.xpose.msra.mxu0 0.0
  %471 = vmatprep.subr.mxu0 0.0
  %472 = vmatpush1.xpose.msra.mxu0 0.0
  %473 = vmatprep.subr.mxu0 0.0
  %474 = vmatpush1.xpose.msra.mxu0 0.0
  %475 = vmatprep.subr.mxu0 0.0
  %476 = vmatpush1.xpose.msra.mxu0 0.0
  %477 = vmatprep.subr.mxu0 0.0
  %478 = vmatpush1.xpose.msra.mxu0 0.0
  %479 = vmatprep.subr.mxu0 0.0
  %480 = vmatpush1.xpose.msra.mxu0 0.0
  %481 = vmatprep.subr.mxu0 0.0
  %482 = vmatpush1.xpose.msra.mxu0 0.0
  %483 = vmatprep.subr.mxu0 0.0
  %484 = vmatpush1.xpose.msra.mxu0 0.0
  %485 = vmatprep.subr.mxu0 0.0
  %486 = vmatpush1.xpose.msra.mxu0 0.0
  %487 = vmatprep.subr.mxu0 0.0
  %488 = vmatpush1.xpose.msra.mxu0 0.0
  %489 = vmatprep.subr.mxu0 0.0
  %490 = vmatpush1.xpose.msra.mxu0 0.0
  %491 = vmatprep.subr.mxu0 0.0
  %492 = vmatpush1.xpose.msra.mxu0 0.0
  %493 = vmatprep.subr.mxu0 0.0
  %494 = vmatpush1.xpose.msra.mxu0 0.0
  %495 = vmatprep.subr.mxu0 0.0
  %496 = vmatpush1.xpose.msra.mxu0 0.0
  %497 = vmatprep.subr.mxu0 0.0
  %498 = vmatpush1.xpose.msra.mxu0 0.0
  %499 = vmatprep.subr.mxu0 0.0
  %500 = vmatpush1.xpose.msra.mxu0 0.0
  %501 = vmatprep.subr.mxu0 0.0
  %502 = vmatpush1.xpose.msra.mxu0 0.0
  %503 = vmatprep.subr.mxu0 0.0
  %504 = vmatpush1.xpose.msra.mxu0 0.0
  %505 = vmatprep.subr.mxu0 0.0
  %506 = vmatpush1.xpose.msra.mxu0 0.0
  %507 = vmatprep.subr.mxu0 0.0
  %508 = vmatpush1.xpose.msra.mxu0 0.0
  %509 = vmatprep.subr.mxu0 0.0
  %510 = vmatpush1.xpose.msra.mxu0 0.0
  %511 = vmatprep.subr.mxu0 0.0
  %512 = vmatpush1.xpose.msra.mxu0 0.0
  %513 = vmatprep.subr.mxu0 0.0
  %514 = vmatpush1.xpose.msra.mxu0 0.0
  %515 = vmatprep.subr.mxu0 0.0
  %516 = vmatpush1.xpose.msra.mxu0 0.0
  %517 = vmatprep.subr.mxu0 0.0
  %518 = vmatpush1.xpose.msra.mxu0 0.0
  %519 = vmatprep.subr.mxu0 0.0
  %520 = vmatpush1.xpose.msra.mxu0 0.0
  %521 = vmatprep.mubr.f32.mxu0 0.0
  %522 = vmatmul.mubr.f32.gmra.mrb[0].mxu0 %v455
  %v523 = vpop.f32.mrb[0].mxu0
  %v524 = vadd.f32 0.0, %v523
  %v525 = vpop.f32.mrb[0].mxu0
  %526 = vdwg.mxu0
  %v527 = vmax.f32 %v524, 1.0
  %v528 = vlaneseq
  %v529 = vshrl.u32 %v528, 7
  %v530 = vsub.s32 0, %v529
  %v531 = vrot.slane %v527, %v530
  %v532 = vrcp.pop %v531
  %v533 = vmul.f32 %v451, %v532
  %v534 = vld [vmem:[%s6] sm:$0xff]
  %vm535 = vcmask 31744
  %v537 = vsel %vm535, %v534, 0
  %vm539 = vcmask 1043456
  %v540 = vsel %vm539, %v58, 0
  %542 = vmatprep.subr.mxu0 0.0
  %543 = vmatpush1.msra.mxu0 %v540
  %544 = vmatprep.subr.mxu0 0.0
  %545 = vmatpush1.msra.mxu0 0.0
  %546 = vmatprep.subr.mxu0 0.0
  %547 = vmatpush1.msra.mxu0 0.0
  %548 = vmatprep.subr.mxu0 0.0
  %549 = vmatpush1.msra.mxu0 0.0
  %550 = vmatprep.subr.mxu0 0.0
  %551 = vmatpush1.msra.mxu0 0.0
  %552 = vmatprep.subr.mxu0 0.0
  %553 = vmatpush1.msra.mxu0 0.0
  %554 = vmatprep.subr.mxu0 0.0
  %555 = vmatpush1.msra.mxu0 0.0
  %556 = vmatprep.subr.mxu0 0.0
  %557 = vmatpush1.msra.mxu0 0.0
  %558 = vmatprep.subr.mxu0 0.0
  %559 = vmatpush1.msra.mxu0 0.0
  %560 = vmatprep.subr.mxu0 0.0
  %561 = vmatpush1.msra.mxu0 0.0
  %562 = vmatprep.subr.mxu0 0.0
  %563 = vmatpush1.msra.mxu0 0.0
  %564 = vmatprep.subr.mxu0 0.0
  %565 = vmatpush1.msra.mxu0 0.0
  %566 = vmatprep.subr.mxu0 0.0
  %567 = vmatpush1.msra.mxu0 0.0
  %568 = vmatprep.subr.mxu0 0.0
  %569 = vmatpush1.msra.mxu0 0.0
  %570 = vmatprep.subr.mxu0 0.0
  %571 = vmatpush1.msra.mxu0 0.0
  %572 = vmatprep.subr.mxu0 0.0
  %573 = vmatpush1.msra.mxu0 0.0
  %574 = vmatprep.subr.mxu0 0.0
  %575 = vmatpush1.msra.mxu0 0.0
  %576 = vmatprep.subr.mxu0 0.0
  %577 = vmatpush1.msra.mxu0 0.0
  %578 = vmatprep.subr.mxu0 0.0
  %579 = vmatpush1.msra.mxu0 0.0
  %580 = vmatprep.subr.mxu0 0.0
  %581 = vmatpush1.msra.mxu0 0.0
  %582 = vmatprep.subr.mxu0 0.0
  %583 = vmatpush1.msra.mxu0 0.0
  %584 = vmatprep.subr.mxu0 0.0
  %585 = vmatpush1.msra.mxu0 0.0
  %586 = vmatprep.subr.mxu0 0.0
  %587 = vmatpush1.msra.mxu0 0.0
  %588 = vmatprep.subr.mxu0 0.0
  %589 = vmatpush1.msra.mxu0 0.0
  %590 = vmatprep.subr.mxu0 0.0
  %591 = vmatpush1.msra.mxu0 0.0
  %592 = vmatprep.subr.mxu0 0.0
  %593 = vmatpush1.msra.mxu0 0.0
  %594 = vmatprep.subr.mxu0 0.0
  %595 = vmatpush1.msra.mxu0 0.0
  %596 = vmatprep.subr.mxu0 0.0
  %597 = vmatpush1.msra.mxu0 0.0
  %598 = vmatprep.subr.mxu0 0.0
  %599 = vmatpush1.msra.mxu0 0.0
  %600 = vmatprep.subr.mxu0 0.0
  %601 = vmatpush1.msra.mxu0 0.0
  %602 = vmatprep.subr.mxu0 0.0
  %603 = vmatpush1.msra.mxu0 0.0
  %604 = vmatprep.subr.mxu0 0.0
  %605 = vmatpush1.msra.mxu0 0.0
  %606 = vmatprep.mubr.f32.mxu0 0.0
  %607 = vmatmul.mubr.f32.gmra.mrb[0].mxu0 %v537
  %v608 = vpop.f32.mrb[0].mxu0
  %v609 = vadd.f32 0.0, %v608
  %v610 = vpop.f32.mrb[0].mxu0
  %611 = vdwg.mxu0
  %v612 = vadd.f32 %v533, %v609
  %v613 = vsel %vm59, %v612, 0.0
  %614 = vadd.xlane.f32.xlu0 %v613
  %v615 = vpop.xlane.xlu0 %614
  %v616 = vrcp.pop 8.0
  %v617 = vmul.f32 %v615, %v616
  %v618 = vsub.f32 %v612, %v617
  %v619 = vmul.f32 %v618, %v618
  %v620 = vsel %vm59, %v619, 0.0
  %621 = vadd.xlane.f32.xlu0 %v620
  %v622 = vpop.xlane.xlu0 %621
  %v623 = vmul.f32 %v622, %v616
  %v624 = vadd.f32 %v623, 1e-05
  %v625 = vrsqrt.pop %v624
  %v626 = vmul.f32 %v618, %v625
  %628 = vset.pattern.permute.xlu0 0
  %629 = vperm.xlu0 %628, %v38
  %v630 = vpop.permute.xlu0 %629
  %v632 = vmul.f32 %v626, %v630
  %634 = vset.pattern.permute.xlu0 0
  %635 = vperm.xlu0 %634, %v39
  %v636 = vpop.permute.xlu0 %635
  %v638 = vadd.f32 %v632, %v636
  %639 = vst.msk [vmem:[%s7] sm:$0xff] %vm59, %v638
  // Predicated region
  $region30: #{tensor_product_conv.1} parent=0 // pred_check
    _
  $region31: #{tensor_product_conv.1} parent=0 // pred_check_branch
    %641 = sbr.rel (0) target = $region33
  $region32: #{tensor_product_conv.1} parent=0 // pred_region
    _
  $region33: #{tensor_product_conv.1} parent=0 // pred_fallthru
    _
  // Predicated region
  $region34: #{tensor_product_conv.1} parent=0 // pred_check
    _
  $region35: #{tensor_product_conv.1} parent=0 // pred_check_branch
    %643 = sbr.rel (0) target = $region37
  $region36: #{tensor_product_conv.1} parent=0 // pred_region
    _
  $region37: #{tensor_product_conv.1} parent=0 // pred_fallthru
    _

</llo_original>
